<compile_context>
chip_gen: v7x
topology: tpu7x:2x2x1
jax: 0.10.0
libtpu: 0.0.40
codegen_flags: <defaults>
</compile_context>

<pallas_src>
import functools
import math

import jax
import jax.numpy as jnp
from jax.experimental import pallas as pl
from jax.experimental.pallas import tpu as pltpu

LN_EPS = 1e-12                       # module default ln_eps (not torch's 1e-5)
VMEM_LIMIT = 48 * 1024 * 1024        # leave headroom on v7x (64 MiB physical)


# ----------------------------------------------------------------------------
# Tile selection helpers (respect the (8, 128) BlockSpec rule for every block)
# NOTE: when no 128/8-divisible tile divides the axis, these fall back to the
# FULL axis (fine at small shapes; pad inputs for large odd dims).
# ----------------------------------------------------------------------------
def _tile_lane(dim, pref):
    """Tile for an axis appearing as a LAST (lane) block dim: multiple of 128
    or the full dim."""
    if dim <= pref:
        return dim
    t = (pref // 128) * 128
    while t >= 128:
        if dim % t == 0:
            return t
        t -= 128
    return dim


def _tile_sublane(dim, pref):
    """Tile for an axis appearing as a SECOND-TO-LAST (sublane) block dim:
    multiple of 8 or the full dim."""
    if dim <= pref:
        return dim
    t = (pref // 8) * 8
    while t >= 8:
        if dim % t == 0:
            return t
        t -= 8
    return dim


# ----------------------------------------------------------------------------
# Pallas kernels
# ----------------------------------------------------------------------------
def _gelu_tanh(y):
    # tanh-approx GELU in f32: transcendental goes through the EUP slot.
    c = 0.7978845608028654  # sqrt(2/pi)
    return 0.5 * y * (1.0 + jnp.tanh(c * (y + 0.044715 * y * y * y)))


def _matmul_kernel(x_ref, w_ref, b_ref, o_ref, acc_ref, *, use_gelu):
    """Tiled x @ w + b (+gelu).  bf16 MXU operands, f32 accumulation."""
    k = pl.program_id(2)

    @pl.when(k == 0)
    def _():
        acc_ref[...] = jnp.zeros_like(acc_ref)

    acc_ref[...] += jnp.dot(x_ref[...], w_ref[...],
                            preferred_element_type=jnp.float32)

    # store only on the final K step (avoids partial / repeated stores)
    @pl.when(k == pl.num_programs(2) - 1)
    def _():
        y = acc_ref[...] + b_ref[...]
        if use_gelu:
            y = _gelu_tanh(y)
        o_ref[...] = y.astype(o_ref.dtype)


def _matmul_add_ln_kernel(x_ref, w_ref, b_ref, r_ref, g_ref, be_ref, o_ref,
                          acc_ref, *, eps):
    """Tiled x @ w + b, then residual add + LayerNorm fused into the epilogue."""
    k = pl.program_id(1)

    @pl.when(k == 0)
    def _():
        acc_ref[...] = jnp.zeros_like(acc_ref)

    acc_ref[...] += jnp.dot(x_ref[...], w_ref[...],
                            preferred_element_type=jnp.float32)

    @pl.when(k == pl.num_programs(1) - 1)
    def _():
        h = acc_ref[...] + b_ref[...] + r_ref[...].astype(jnp.float32)
        mean = jnp.mean(h, axis=-1, keepdims=True)
        var = jnp.mean(jnp.square(h - mean), axis=-1, keepdims=True)
        y = (h - mean) * jax.lax.rsqrt(var + eps) * g_ref[...] + be_ref[...]
        o_ref[...] = y.astype(o_ref.dtype)


def _flash_attn_kernel(q_ref, k_ref, v_ref, mask_ref, o_ref,
                       m_sc, l_sc, acc_sc):
    """Flash attention for one (batch*head, q-tile): online softmax over the
    KV-tile grid axis.  q_ref:[tq,Dh], k/v_ref:[tk,Dh], mask_ref:[1,tk].
    The 1/sqrt(Dh) scale is already folded into the Q projection weights."""
    ki = pl.program_id(2)

    @pl.when(ki == 0)
    def _():
        m_sc[...] = jnp.full(m_sc.shape, -jnp.inf, m_sc.dtype)
        l_sc[...] = jnp.zeros_like(l_sc)
        acc_sc[...] = jnp.zeros_like(acc_sc)

    q = q_ref[...]                                 # [tq, Dh] bf16
    k = k_ref[...]                                 # [tk, Dh] bf16
    v = v_ref[...]                                 # [tk, Dh] bf16
    bias = mask_ref[...]                           # [1, tk]  f32 additive mask

    # scores: q @ k^T (contract Dh) -> [tq, tk], f32 accumulation on MXU
    s = jax.lax.dot_general(q, k, (((1,), (1,)), ((), ())),
                            preferred_element_type=jnp.float32)
    s = s + bias

    m_prev = m_sc[...]
    m_new = jnp.maximum(m_prev, jnp.max(s, axis=-1, keepdims=True))
    alpha = jnp.exp(m_prev - m_new)
    p = jnp.exp(s - m_new)
    l_sc[...] = alpha * l_sc[...] + jnp.sum(p, axis=-1, keepdims=True)
    acc_sc[...] = alpha * acc_sc[...] + jnp.dot(
        p.astype(jnp.bfloat16), v, preferred_element_type=jnp.float32)
    m_sc[...] = m_new

    @pl.when(ki == pl.num_programs(2) - 1)
    def _():
        o_ref[...] = (acc_sc[...] *
                      pl.reciprocal(l_sc[...], approx=True)).astype(o_ref.dtype)


# ----------------------------------------------------------------------------
# Pallas wrappers
# ----------------------------------------------------------------------------
def linear(x2d, w, b, *, use_gelu=False, tm=256, tn=512, tk=512):
    """Tiled fused matmul+bias(+gelu).  x2d: [M,K] bf16, w: [K,N] bf16,
    b: [N] f32 -> [M,N] bf16."""
    M, K = x2d.shape
    N = w.shape[1]
    tm = _tile_sublane(M, tm)
    tn = _tile_lane(N, tn)
    tk = _tile_lane(K, tk)           # tk is a lane dim of x and a sublane dim of w
    grid = (M // tm, N // tn, K // tk)
    return pl.pallas_call(
        functools.partial(_matmul_kernel, use_gelu=use_gelu),
        out_shape=jax.ShapeDtypeStruct((M, N), jnp.bfloat16),
        grid=grid,
        in_specs=[
            pl.BlockSpec((tm, tk), lambda i, j, k: (i, k)),
            pl.BlockSpec((tk, tn), lambda i, j, k: (k, j)),
            pl.BlockSpec((1, tn), lambda i, j, k: (0, j)),   # bias refetched only on j change
        ],
        out_specs=pl.BlockSpec((tm, tn), lambda i, j, k: (i, j)),
        scratch_shapes=[pltpu.VMEM((tm, tn), jnp.float32)],
        compiler_params=pltpu.CompilerParams(
            dimension_semantics=("parallel", "parallel", "arbitrary"),
            vmem_limit_bytes=VMEM_LIMIT),
    )(x2d, w, b.reshape(1, N))


def linear_add_ln(x2d, w, b, residual, gamma, beta, *, eps=LN_EPS, tm=256, tk=256):
    """LayerNorm(residual + x2d @ w + b) with add+LN fused into the matmul
    epilogue.  N (= d_model) stays whole per block so the LN row reduction is
    in-kernel; tk kept at 256 (and bf16 weights) so the double-buffered (tk,N)
    weight block fits v7x VMEM."""
    M, K = x2d.shape
    N = w.shape[1]
    tm = _tile_sublane(M, tm)
    tk = _tile_lane(K, tk)
    grid = (M // tm, K // tk)
    return pl.pallas_call(
        functools.partial(_matmul_add_ln_kernel, eps=eps),
        out_shape=jax.ShapeDtypeStruct((M, N), jnp.bfloat16),
        grid=grid,
        in_specs=[
            pl.BlockSpec((tm, tk), lambda i, k: (i, k)),
            pl.BlockSpec((tk, N), lambda i, k: (k, 0)),
            pl.BlockSpec((1, N), lambda i, k: (0, 0)),
            pl.BlockSpec((tm, N), lambda i, k: (i, 0)),        # residual (bf16)
            pl.BlockSpec((1, N), lambda i, k: (0, 0)),         # gamma (f32)
            pl.BlockSpec((1, N), lambda i, k: (0, 0)),         # beta  (f32)
        ],
        out_specs=pl.BlockSpec((tm, N), lambda i, k: (i, 0)),
        scratch_shapes=[pltpu.VMEM((tm, N), jnp.float32)],
        compiler_params=pltpu.CompilerParams(
            dimension_semantics=("parallel", "arbitrary"),
            vmem_limit_bytes=VMEM_LIMIT),
    )(x2d, w, b.reshape(1, N), residual, gamma.reshape(1, N), beta.reshape(1, N))


def flash_attention(q, k, v, add_mask):
    """q,k,v: [B, H, S, Dh] bf16, add_mask: [B, 1, S] f32 additive
    -> [B, H, S, Dh] bf16.  (B, H) flattened into one parallel grid axis so
    both v7x TensorCores are fed even at B=1."""
    B, H, S, Dh = q.shape
    tq = _tile_sublane(S, 256)
    tk = _tile_lane(S, 512)          # tk is also the lane dim of the mask block
    grid = (B * H, S // tq, S // tk)

    q_spec = pl.BlockSpec((None, None, tq, Dh),
                          lambda bh, qi, ki: (bh // H, bh % H, qi, 0))
    kv_spec = pl.BlockSpec((None, None, tk, Dh),
                           lambda bh, qi, ki: (bh // H, bh % H, ki, 0))
    m_spec = pl.BlockSpec((None, 1, tk), lambda bh, qi, ki: (bh // H, 0, ki))
    o_spec = pl.BlockSpec((None, None, tq, Dh),
                          lambda bh, qi, ki: (bh // H, bh % H, qi, 0))

    return pl.pallas_call(
        _flash_attn_kernel,
        out_shape=jax.ShapeDtypeStruct((B, H, S, Dh), jnp.bfloat16),
        grid=grid,
        in_specs=[q_spec, kv_spec, kv_spec, m_spec],
        out_specs=o_spec,
        scratch_shapes=[
            pltpu.VMEM((tq, 1), jnp.float32),    # running max
            pltpu.VMEM((tq, 1), jnp.float32),    # running denom
            pltpu.VMEM((tq, Dh), jnp.float32),   # running numerator
        ],
        compiler_params=pltpu.CompilerParams(
            dimension_semantics=("parallel", "parallel", "arbitrary"),
            vmem_limit_bytes=VMEM_LIMIT),
    )(q, k, v, add_mask)


# ----------------------------------------------------------------------------
# Model (forward pass)
# ----------------------------------------------------------------------------
def create_attention_mask(attention_mask, input_shape):
    B, S = input_shape
    if attention_mask is None:
        attention_mask = jnp.ones((B, S), jnp.float32)
    ext = attention_mask.astype(jnp.float32)[:, None, :]     # [B, 1, S]
    return (1.0 - ext) * -10000.0                            # additive mask


def encoder_layer(p, x, add_mask, n_heads):
    """Post-LN transformer encoder layer.  x: [B, S, D] bf16."""
    B, S, D = x.shape
    Dh = D // n_heads
    x2 = x.reshape(B * S, D)

    # ---- fused QKV projection: one tiled matmul, x read from HBM once ------
    qkv = linear(x2, p["w_qkv"], p["b_qkv"])                  # [B*S, 3D] bf16
    # TODO(synk): head split/merge transposes stay in XLA — a head-minor last
    # block dim (Dh < 128) in the flash BlockSpec would violate the (8,128)
    # block rule, so the safe [B,H,S,Dh] layout (with two XLA transposes per
    # layer) is kept.
    qkv = qkv.reshape(B, S, 3, n_heads, Dh).transpose(2, 0, 3, 1, 4)  # [3,B,H,S,Dh]

    ctx = flash_attention(qkv[0], qkv[1], qkv[2], add_mask)   # [B, H, S, Dh]
    ctx = ctx.transpose(0, 2, 1, 3).reshape(B * S, D)

    # ---- merge matrix + residual + LayerNorm fused in one kernel ------------
    h = linear_add_ln(ctx, p["wo"], p["bo"], x2, p["ln1_g"], p["ln1_b"])

    # ---- feedforward (up proj + GELU fused; down proj + add + LN fused) -----
    ff = linear(h, p["w1"], p["b1"], use_gelu=True)
    out = linear_add_ln(ff, p["w2"], p["b2"], h, p["ln2_g"], p["ln2_b"])
    return out.reshape(B, S, D)


def transformer_encoder_forward(params, input_ids, attention_mask=None,
                                token_type_ids=None):
    B, S = input_ids.shape
    n_heads = params["n_heads"]
    add_mask = create_attention_mask(attention_mask, (B, S))

    if token_type_ids is None:
        token_type_ids = jnp.zeros((B, S), jnp.int32)

    # --- TransformerEmbedding: word + positional + token-type embeddings -----
    # TODO(synk): embedding gathers stay in XLA (data-dependent gather needs
    # manual DMA in Pallas).
    pos_ids = jnp.arange(S, dtype=jnp.int32)
    emb = (jnp.take(params["word_emb"], input_ids, axis=0)
           + jnp.take(params["pos_emb"], pos_ids, axis=0)[None, :, :]
           + jnp.take(params["type_emb"], token_type_ids, axis=0))
    # use_embedding_layer_norm=False -> no LN; dropout is identity at inference.

    h = emb.astype(jnp.bfloat16)        # bf16 activations end-to-end
    for layer_params in params["layers"]:
        h = encoder_layer(layer_params, h, add_mask, n_heads)

    # encoder_type='post_ln' -> post_encoder_ln is Identity
    return (h,)


# ----------------------------------------------------------------------------
# Parameter init (module-style, f32) + kernel-ready prep (bf16, fused, scaled)
# ----------------------------------------------------------------------------
def init_params(key, d_model, vocab_size, max_length, pad_token_id,
                token_type_vocab_size, n_heads, dim_feedforward, num_layers):
    ks = jax.random.split(key, 3 + num_layers)

    def nrm(k, shape):
        return 0.02 * jax.random.normal(k, shape, jnp.float32)

    word_emb = nrm(ks[0], (vocab_size, d_model))
    word_emb = word_emb.at[pad_token_id].set(0.0)   # padding_idx row zeroed
    pos_emb = nrm(ks[1], (max_length, d_model))
    type_emb = nrm(ks[2], (token_type_vocab_size, d_model))

    layers = []
    for li in range(num_layers):
        lk = jax.random.split(ks[3 + li], 6)
        layers.append(dict(
            wq=nrm(lk[0], (d_model, d_model)), bq=jnp.zeros((d_model,), jnp.float32),
            wk=nrm(lk[1], (d_model, d_model)), bk=jnp.zeros((d_model,), jnp.float32),
            wv=nrm(lk[2], (d_model, d_model)), bv=jnp.zeros((d_model,), jnp.float32),
            wo=nrm(lk[3], (d_model, d_model)), bo=jnp.zeros((d_model,), jnp.float32),
            w1=nrm(lk[4], (d_model, dim_feedforward)),
            b1=jnp.zeros((dim_feedforward,), jnp.float32),
            w2=nrm(lk[5], (dim_feedforward, d_model)),
            b2=jnp.zeros((d_model,), jnp.float32),
            ln1_g=jnp.ones((d_model,), jnp.float32),
            ln1_b=jnp.zeros((d_model,), jnp.float32),
            ln2_g=jnp.ones((d_model,), jnp.float32),
            ln2_b=jnp.zeros((d_model,), jnp.float32),
        ))
    return dict(word_emb=word_emb, pos_emb=pos_emb, type_emb=type_emb,
                layers=layers, n_heads=n_heads, d_model=d_model)


def prepare_params(params):
    """One-time param prep: fuse QKV, fold 1/sqrt(Dh) into the Q projection,
    and pre-cast all matmul weights to bf16 (biases / LN params stay f32)."""
    n_heads = params["n_heads"]
    d_model = params["d_model"]
    scale = 1.0 / math.sqrt(d_model // n_heads)

    layers = []
    for p in params["layers"]:
        w_qkv = jnp.concatenate([p["wq"] * scale, p["wk"], p["wv"]], axis=1)
        b_qkv = jnp.concatenate([p["bq"] * scale, p["bk"], p["bv"]], axis=0)
        layers.append(dict(
            w_qkv=w_qkv.astype(jnp.bfloat16), b_qkv=b_qkv,
            wo=p["wo"].astype(jnp.bfloat16), bo=p["bo"],
            w1=p["w1"].astype(jnp.bfloat16), b1=p["b1"],
            w2=p["w2"].astype(jnp.bfloat16), b2=p["b2"],
            ln1_g=p["ln1_g"], ln1_b=p["ln1_b"],
            ln2_g=p["ln2_g"], ln2_b=p["ln2_b"],
        ))
    return dict(word_emb=params["word_emb"], pos_emb=params["pos_emb"],
                type_emb=params["type_emb"], layers=layers, n_heads=n_heads)


# ----------------------------------------------------------------------------
if __name__ == "__main__":
    # small config consistent with the module
    D_MODEL = 32
    VOCAB = 64
    MAX_LEN = 16
    PAD_ID = 0
    TYPE_VOCAB = 2
    N_HEADS = 4
    D_FF = 64
    N_LAYERS = 2
    B, S = 2, 8

    key = jax.random.PRNGKey(0)
    pkey, ikey, mkey = jax.random.split(key, 3)

    raw_params = init_params(pkey, D_MODEL, VOCAB, MAX_LEN, PAD_ID,
                             TYPE_VOCAB, N_HEADS, D_FF, N_LAYERS)
    params = prepare_params(raw_params)

    input_ids = jax.random.randint(ikey, (B, S), 1, VOCAB, dtype=jnp.int32)
    attention_mask = jnp.ones((B, S), jnp.float32).at[:, -2:].set(0.0)  # pad last 2
    token_type_ids = jnp.zeros((B, S), jnp.int32)

    out = transformer_encoder_forward(params, input_ids,
                                      attention_mask=attention_mask,
                                      token_type_ids=token_type_ids)
    hidden = jax.block_until_ready(out[0])
    assert hidden.shape == (B, S, D_MODEL)
    assert bool(jnp.all(jnp.isfinite(hidden.astype(jnp.float32))))
    print("KERNEL_OK")
</pallas_src>

<mosaic_0001>
module attributes {stable_mosaic.version = 11 : i64} {
  func.func @_matmul_kernel(%arg0: i32, %arg1: i32, %arg2: i32, %arg3: memref<16x32xbf16, #tpu.memory_space<vmem>>, %arg4: memref<32x96xbf16, #tpu.memory_space<vmem>>, %arg5: memref<1x96xf32, #tpu.memory_space<vmem>>, %arg6: memref<16x96xbf16, #tpu.memory_space<vmem>>, %arg7: memref<16x96xf32, #tpu.memory_space<vmem>>) attributes {dimension_semantics = [#tpu.dimension_semantics<parallel>, #tpu.dimension_semantics<parallel>, #tpu.dimension_semantics<arbitrary>], iteration_bounds = array<i64: 1, 1, 1>, scalar_prefetch = 0 : i64, scratch_operands = 1 : i64, tpu.core_type = #tpu.core_type<tc>, window_params = [{transform_indices = @transform_0, window_bounds = array<i64: 16, 32>}, {transform_indices = @transform_1, window_bounds = array<i64: 32, 96>}, {transform_indices = @transform_2, window_bounds = array<i64: 1, 96>}, {transform_indices = @transform_3, window_bounds = array<i64: 16, 96>}]} {
    %c0_i32 = arith.constant 0 : i32
    %0 = arith.cmpi eq, %arg2, %c0_i32 : i32
    %1 = arith.extui %0 : i1 to i32
    %c0_i32_0 = arith.constant 0 : i32
    %2 = arith.cmpi ne, %1, %c0_i32_0 : i32
    scf.if %2 {
      %cst_10 = arith.constant 0.000000e+00 : f32
      %12 = vector.broadcast %cst_10 : f32 to vector<16x96xf32>
      %c0_11 = arith.constant 0 : index
      %c0_12 = arith.constant 0 : index
      %13 = vector.load %arg7[%c0_11, %c0_12] : memref<16x96xf32, #tpu.memory_space<vmem>>, vector<16x96xf32>
      tpu.vector_store %arg7[%c0_11, %c0_12], %12 {strides = array<i32>} : memref<16x96xf32, #tpu.memory_space<vmem>>, vector<16x96xf32>,
    } else {
    }
    %c0 = arith.constant 0 : index
    %c0_1 = arith.constant 0 : index
    %3 = vector.load %arg7[%c0, %c0_1] : memref<16x96xf32, #tpu.memory_space<vmem>>, vector<16x96xf32>
    %c0_2 = arith.constant 0 : index
    %c0_3 = arith.constant 0 : index
    %4 = vector.load %arg3[%c0_2, %c0_3] : memref<16x32xbf16, #tpu.memory_space<vmem>>, vector<16x32xbf16>
    %c0_4 = arith.constant 0 : index
    %c0_5 = arith.constant 0 : index
    %5 = vector.load %arg4[%c0_4, %c0_5] : memref<32x96xbf16, #tpu.memory_space<vmem>>, vector<32x96xbf16>
    %cst = arith.constant dense<0.000000e+00> : vector<16x96xf32>
    %6 = tpu.matmul %4, %5, %cst {dimension_numbers = #tpu.dot_dimension_numbers<[1], [0], [0], [1], [0, 0, 1, 1], [], []>} : vector<16x32xbf16>, vector<32x96xbf16>, vector<16x96xf32> -> vector<16x96xf32>
    %7 = arith.addf %3, %6 : vector<16x96xf32>
    %c0_6 = arith.constant 0 : index
    %c0_7 = arith.constant 0 : index
    %8 = vector.load %arg7[%c0_6, %c0_7] : memref<16x96xf32, #tpu.memory_space<vmem>>, vector<16x96xf32>
    tpu.vector_store %arg7[%c0_6, %c0_7], %7 {strides = array<i32>} : memref<16x96xf32, #tpu.memory_space<vmem>>, vector<16x96xf32>,
    %c0_i32_8 = arith.constant 0 : i32
    %9 = arith.cmpi eq, %arg2, %c0_i32_8 : i32
    %10 = arith.extui %9 : i1 to i32
    %c0_i32_9 = arith.constant 0 : i32
    %11 = arith.cmpi ne, %10, %c0_i32_9 : i32
    scf.if %11 {
      %c0_10 = arith.constant 0 : index
      %c0_11 = arith.constant 0 : index
      %12 = vector.load %arg7[%c0_10, %c0_11] : memref<16x96xf32, #tpu.memory_space<vmem>>, vector<16x96xf32>
      %c0_12 = arith.constant 0 : index
      %c0_13 = arith.constant 0 : index
      %13 = vector.load %arg5[%c0_12, %c0_13] : memref<1x96xf32, #tpu.memory_space<vmem>>, vector<1x96xf32>
      %14 = vector.broadcast %13 : vector<1x96xf32> to vector<16x96xf32>
      %15 = arith.addf %12, %14 : vector<16x96xf32>
      %16 = arith.truncf %15 : vector<16x96xf32> to vector<16x96xbf16>
      %c0_14 = arith.constant 0 : index
      %c0_15 = arith.constant 0 : index
      %17 = vector.load %arg6[%c0_14, %c0_15] : memref<16x96xbf16, #tpu.memory_space<vmem>>, vector<16x96xbf16>
      tpu.vector_store %arg6[%c0_14, %c0_15], %16 {strides = array<i32>} : memref<16x96xbf16, #tpu.memory_space<vmem>>, vector<16x96xbf16>,
    } else {
    }
    return
  }
  func.func @transform_0(%arg0: i32, %arg1: i32, %arg2: i32) -> (i32, i32) {
    %c0_i32 = arith.constant 0 : i32
    return %arg0, %arg2 : i32, i32
  }
  func.func @transform_1(%arg0: i32, %arg1: i32, %arg2: i32) -> (i32, i32) {
    %c0_i32 = arith.constant 0 : i32
    return %arg2, %arg1 : i32, i32
  }
  func.func @transform_2(%arg0: i32, %arg1: i32, %arg2: i32) -> (i32, i32) {
    %c0_i32 = arith.constant 0 : i32
    %c0_i32_0 = arith.constant 0 : i32
    return %c0_i32, %arg1 : i32, i32
  }
  func.func @transform_3(%arg0: i32, %arg1: i32, %arg2: i32) -> (i32, i32) {
    %c0_i32 = arith.constant 0 : i32
    return %arg0, %arg1 : i32, i32
  }
}

</mosaic_0001>

<llo_original>
// kernel: tpu_custom_call.1
$region0: #{tpu_custom_call.1}
  #allocation0 [shape = 'u32[]', space=smem, size = 0x4, offset = 0x4, fixed_abs, tag = 'smem constant byte address 0x4 - core index']
  #allocation1 [shape = 'u32[144,128]{1,0:T(1,128)}', space=vmem, size = 0x12000, scoped, tag = 'internal scratch']
  #allocation2 [shape = 'f32[16,96]{1,0:T(8,128)}', space=vmem, size = 0x2000, scoped, tag = 'scratch operand']
  %s0 = inlined_call_operand.hbm [shape: bf16[16,32], index: 0, kind: input, shape index: {}]
  %s1 = inlined_call_operand.hbm [shape: bf16[32,96], index: 1, kind: input, shape index: {}]
  %s2 = inlined_call_operand.vmem [shape: f32[1,96], index: 2, kind: input, shape index: {}]
  %s3 = inlined_call_operand.hbm [shape: bf16[16,96], index: 3, kind: output, shape index: {}]
  %s4 = sld [smem:[#allocation0]]
  $region38: #{tpu_custom_call.1} parent=0
    _
  %s6 = ssub.s32 1, %s4
  %s7 = scalar_select 0, %s6, %s4
  $region1: #{tpu_custom_call.1} parent=0
    #allocation3 [shape = 'u8[4096]{0}', space=vmem, size = 0x1000, scoped, tag = 'input window, operand 0, single buffered']
    #allocation4 [shape = 's32[1]{0}', space=sflag, size = 0x4, scoped, tag = 'scoped memory for tpu_custom_call.1']
    #allocation5 [shape = 's32[1]{0}', space=sflag, size = 0x4, scoped, tag = 'scoped memory for tpu_custom_call.1']
    #allocation6 [shape = 'u8[8192]{0}', space=vmem, size = 0x2000, scoped, tag = 'input window, operand 1, single buffered']
    #allocation7 [shape = 's32[1]{0}', space=sflag, size = 0x4, scoped, tag = 'scoped memory for tpu_custom_call.1']
    #allocation8 [shape = 'u8[4096]{0}', space=vmem, size = 0x1000, scoped, tag = 'output window, operand 0, single buffered']
    %8 = vsyncpa [#allocation4], 0
    %9 = vsyncpa [#allocation7], 0
    %10 = vsyncpa [#allocation5], 0
    // Predicated region
    $region2: #{tpu_custom_call.1} parent=1 // pred_check
      _
    $region3: #{tpu_custom_call.1} parent=1 // pred_check_branch
      %12 = sbr.rel (0) target = $region5
    $region4: #{tpu_custom_call.1} parent=1 // pred_region
      %s14 = ssub.s32 128, 128
      %15 = vsyncadd [#allocation4], %s14
      %s16 = sshll.u32 [#allocation3], 4
      %s17 = int_to_ptr.vmem [resolvable:$true] %s16
      %22 = dma.hbm_to_vmem [thread:$0]  %s0, 128, %s17, [#allocation4], 64, 64, 4
    $region5: #{tpu_custom_call.1} parent=1 // pred_fallthru
      _
    // Predicated region
    $region6: #{tpu_custom_call.1} parent=1 // pred_check
      _
    $region7: #{tpu_custom_call.1} parent=1 // pred_check_branch
      %24 = sbr.rel (0) target = $region9
    $region8: #{tpu_custom_call.1} parent=1 // pred_region
      %s26 = ssub.s32 256, 256
      %27 = vsyncadd [#allocation7], %s26
      %s28 = sshll.u32 [#allocation6], 4
      %s29 = int_to_ptr.vmem [resolvable:$true] %s28
      %34 = dma.hbm_to_vmem [thread:$0]  %s1, 256, %s29, [#allocation7], 64, 64, 4
    $region9: #{tpu_custom_call.1} parent=1 // pred_fallthru
      _
    // Predicated region
    $region10: #{tpu_custom_call.1} parent=1 // pred_check
      _
    $region11: #{tpu_custom_call.1} parent=1 // pred_check_branch
      %36 = sbr.rel (0) target = $region13
    $region12: #{tpu_custom_call.1} parent=1 // pred_region
      _
    $region13: #{tpu_custom_call.1} parent=1 // pred_fallthru
      _
    // Predicated region
    $region14: #{tpu_custom_call.1} parent=1 // pred_check
      _
    $region15: #{tpu_custom_call.1} parent=1 // pred_check_branch
      %38 = sbr.rel (0) target = $region17
    $region16: #{tpu_custom_call.1} parent=1 // pred_region
      %39 = dma.done [#allocation4], 128
    $region17: #{tpu_custom_call.1} parent=1 // pred_fallthru
      _
    // Predicated region
    $region18: #{tpu_custom_call.1} parent=1 // pred_check
      _
    $region19: #{tpu_custom_call.1} parent=1 // pred_check_branch
      %41 = sbr.rel (0) target = $region21
    $region20: #{tpu_custom_call.1} parent=1 // pred_region
      %42 = dma.done [#allocation7], 256
    $region21: #{tpu_custom_call.1} parent=1 // pred_fallthru
      _
    %p44 = scmp.eq.s32.totalorder 0, 0
    // Predicated region
    $region22: #{tpu_custom_call.1} parent=1 // pred_check
      %p45 = pneg %p44
    $region23: #{tpu_custom_call.1} parent=1 // pred_check_branch
      %47 = sbr.rel (%p45) target = $region25
    $region24: #{tpu_custom_call.1} parent=1 // pred_region
      %vm48 = vcmask 785408
      %49 = vst.msk [vmem:[#allocation2] sm:$0xff] %vm48, 0.0
      %50 = vst.msk [vmem:[#allocation2 + $0x8] sm:$0xff] %vm48, 0.0
    $region25: #{tpu_custom_call.1} parent=1 // pred_fallthru
      _
    %v51 = vld [vmem:[#allocation2] sm:$0xff]
    %v52 = vld [vmem:[#allocation2 + $0x8] sm:$0xff]
    %v53 = vld [vmem:[#allocation3] sm:$0xf]
    %v54 = vld [vmem:[#allocation3 + $0x4] sm:$0xf]
    %v55 = vld [vmem:[#allocation6] sm:$0xf]
    %v56 = vld [vmem:[#allocation6 + $0x4] sm:$0xf]
    %v57 = vld [vmem:[#allocation6 + $0x8] sm:$0xf]
    %v58 = vld [vmem:[#allocation6 + $0xc] sm:$0xf]
    %v61 = vunpack.c.l.b16 %v53
    %v62 = vunpack.c.l.b16 %v54
    %v63 = vpack.c.b16 %v62, %v61
    %v68 = vunpack.c.l.b16 %v55
    %v69 = vunpack.c.l.b16 %v56
    %v70 = vunpack.c.l.b16 %v57
    %v71 = vunpack.c.l.b16 %v58
    %v72 = vpack.c.b16 %v69, %v68
    %v73 = vpack.c.b16 %v71, %v70
    %vm76 = vcmask 261120
    %v78 = vsel %vm76, %v63, 0
    %80 = vmatprep.subr.bf16.mxu0 0
    %81 = vmatpush1.bf16.msra.mxu0 %v72
    %82 = vmatprep.subr.bf16.mxu0 0
    %83 = vmatpush1.bf16.msra.mxu0 %v73
    %84 = vmatprep.subr.bf16.mxu0 0
    %85 = vmatpush1.bf16.msra.mxu0 0
    %86 = vmatprep.subr.bf16.mxu0 0
    %87 = vmatpush1.bf16.msra.mxu0 0
    %88 = vmatprep.subr.bf16.mxu0 0
    %89 = vmatpush1.bf16.msra.mxu0 0
    %90 = vmatprep.subr.bf16.mxu0 0
    %91 = vmatpush1.bf16.msra.mxu0 0
    %92 = vmatprep.subr.bf16.mxu0 0
    %93 = vmatpush1.bf16.msra.mxu0 0
    %94 = vmatprep.subr.bf16.mxu0 0
    %95 = vmatpush1.bf16.msra.mxu0 0
    %96 = vmatprep.subr.bf16.mxu0 0
    %97 = vmatpush1.bf16.msra.mxu0 0
    %98 = vmatprep.subr.bf16.mxu0 0
    %99 = vmatpush1.bf16.msra.mxu0 0
    %100 = vmatprep.subr.bf16.mxu0 0
    %101 = vmatpush1.bf16.msra.mxu0 0
    %102 = vmatprep.subr.bf16.mxu0 0
    %103 = vmatpush1.bf16.msra.mxu0 0
    %104 = vmatprep.subr.bf16.mxu0 0
    %105 = vmatpush1.bf16.msra.mxu0 0
    %106 = vmatprep.subr.bf16.mxu0 0
    %107 = vmatpush1.bf16.msra.mxu0 0
    %108 = vmatprep.subr.bf16.mxu0 0
    %109 = vmatpush1.bf16.msra.mxu0 0
    %110 = vmatprep.subr.bf16.mxu0 0
    %111 = vmatpush1.bf16.msra.mxu0 0
    %112 = vmatprep.mubr.bf16.mxu0 0
    %113 = vmatmul.mubr.bf16.gmra.mrb[0].mxu0 %v78
    %v114 = vpop.f32.mrb[0].mxu0
    %v115 = vadd.f32 0.0, %v114
    %v116 = vpop.f32.mrb[0].mxu0
    %v117 = vpop.f32.mrb[0].mxu0
    %v118 = vadd.f32 0.0, %v117
    %v119 = vpop.f32.mrb[0].mxu0
    %120 = vdwg.mxu0
    %v121 = vadd.f32 %v51, %v115
    %v122 = vadd.f32 %v52, %v118
    %vm123 = vcmask 785408
    %124 = vst.msk [vmem:[#allocation2] sm:$0xff] %vm123, %v121
    %125 = vst.msk [vmem:[#allocation2 + $0x8] sm:$0xff] %vm123, %v122
    // Predicated region
    $region26: #{tpu_custom_call.1} parent=1 // pred_check
      %p126 = pneg %p44
    $region27: #{tpu_custom_call.1} parent=1 // pred_check_branch
      %128 = sbr.rel (%p126) target = $region29
    $region28: #{tpu_custom_call.1} parent=1 // pred_region
      %v129 = vld [vmem:[#allocation2] sm:$0xff]
      %v130 = vld [vmem:[#allocation2 + $0x8] sm:$0xff]
      %v131 = vld [vmem:[%s2] sm:$0x1]
      %v133 = vlaneseq
      %v134 = vshrl.u32 %v133, 7
      %v135 = vsub.s32 0, %v134
      %v136 = vrot.slane %v131, %v135
      %v138 = vadd.f32 %v129, %v136
      %v139 = vadd.f32 %v130, %v136
      %v140 = vpack.c.bf16 %v139, %v138
      %v142 = vunpack.c.l.b16 %v140
      %v143 = vunpack.c.h.b16 %v140
      %v144 = vpack.c.b16 %v142, %v142
      %v145 = vpack.c.b16 %v143, %v143
      %vm148 = vcmask 781312
      %149 = vst.msk [vmem:[#allocation8] sm:$0xf] %vm148, %v144
      %150 = vst.msk [vmem:[#allocation8 + $0x4] sm:$0xf] %vm148, %v145
    $region29: #{tpu_custom_call.1} parent=1 // pred_fallthru
      _
    // Predicated region
    $region30: #{tpu_custom_call.1} parent=1 // pred_check
      _
    $region31: #{tpu_custom_call.1} parent=1 // pred_check_branch
      %152 = sbr.rel (0) target = $region33
    $region32: #{tpu_custom_call.1} parent=1 // pred_region
      %s154 = ssub.s32 128, 128
      %155 = vsyncadd [#allocation5], %s154
      %s156 = sshll.u32 [#allocation8], 4
      %s157 = int_to_ptr.vmem [resolvable:$true] %s156
      %162 = dma.vmem_to_hbm [thread:$0]  %s157, 128, %s3, [#allocation5], 64, 64, 4
    $region33: #{tpu_custom_call.1} parent=1 // pred_fallthru
      _
    // Predicated region
    $region34: #{tpu_custom_call.1} parent=1 // pred_check
      _
    $region35: #{tpu_custom_call.1} parent=1 // pred_check_branch
      %164 = sbr.rel (0) target = $region37
    $region36: #{tpu_custom_call.1} parent=1 // pred_region
      %165 = dma.done [#allocation5], 128
    $region37: #{tpu_custom_call.1} parent=1 // pred_fallthru
      _
    %166 = vsyncpa [#allocation4], 1
    %167 = vsyncpa [#allocation7], 1
    %168 = vsyncpa [#allocation5], 1

</llo_original>
